<compile_context>
chip_gen: v7x
topology: tpu7x:2x2x1
jax: 0.10.0
libtpu: 0.0.40
codegen_flags: <defaults>
</compile_context>

<pallas_src>
import functools
import math

import jax
import jax.numpy as jnp
import numpy as np
from jax.experimental import pallas as pl
from jax.experimental.pallas import tpu as pltpu


def _elbo_kernel(x_ref, lbl_ref, mu_w_ref, rho_w_ref, mu_b_ref, rho_b_ref,
                 eps_w_ref, eps_b_ref, loss_ref, preds_ref, *,
                 n_samples, num_classes, prior_sigma, nc_pad):
    N = n_samples
    C = num_classes
    B = x_ref.shape[0]
    D = mu_w_ref.shape[0]
    NC = N * C

    # --- sigma / log(sigma) on the UNTILED params: EUP transcendentals once ---
    sigma_w = jax.nn.softplus(rho_w_ref[...])            # (D, C)
    sigma_b = jax.nn.softplus(rho_b_ref[...])            # (1, C)
    log_sigma_w = jnp.log(sigma_w)                       # (D, C)
    log_sigma_b = jnp.log(sigma_b)                       # (1, C)

    # --- in-kernel lane replication (cheap copies; no extra HBM traffic) ------
    mu_w_t = jnp.tile(mu_w_ref[...], (1, N))             # (D, N*C)
    mu_b_t = jnp.tile(mu_b_ref[...], (1, N))             # (1, N*C)
    sigma_w_t = jnp.tile(sigma_w, (1, N))                # (D, N*C)
    sigma_b_t = jnp.tile(sigma_b, (1, N))                # (1, N*C)

    # --- reparameterized weights for all N samples at once (elementwise) ------
    # eps is laid out sample-major along lanes: column n*C + c is sample n.
    eps_w = eps_w_ref[...]                               # (D, N*C)
    eps_b = eps_b_ref[...]                               # (1, N*C)
    w_all = mu_w_t + sigma_w_t * eps_w                   # (D, N*C)
    b_all = mu_b_t + sigma_b_t * eps_b                   # (1, N*C)

    # --- single batched matmul over all N Monte-Carlo samples -----------------
    logits_all = jnp.dot(x_ref[...], w_all,
                         preferred_element_type=jnp.float32) + b_all   # (B, N*C)

    # --- per-sample log-softmax (N small; static lane slices, unrolled) -------
    chunks = []
    for n in range(N):
        logits = logits_all[:, n * C:(n + 1) * C]        # (B, C)
        m = jnp.max(logits, axis=-1, keepdims=True)
        lse = m + jnp.log(jnp.sum(jnp.exp(logits - m), axis=-1, keepdims=True))
        chunks.append(logits - lse)                      # log softmax
    log_probs = jnp.concatenate(chunks, axis=-1)         # (B, N*C)

    # One-hot mask built in-kernel from int32 labels (iota + compare, VPU).
    onehot = (jax.lax.broadcasted_iota(jnp.int32, (B, C), 1)
              == lbl_ref[...]).astype(jnp.float32)       # (B, C)
    tgt_t = jnp.tile(onehot, (1, N))                     # (B, N*C)
    nll_total = -jnp.sum(tgt_t * log_probs)              # single reduction

    # Lane-dense predictions slab: pad N*C up to a multiple of 128 and do one
    # full-width (unmasked) store.
    preds = jnp.exp(log_probs)                           # (B, N*C)
    if nc_pad > NC:
        preds = jnp.concatenate(
            [preds, jnp.zeros((B, nc_pad - NC), jnp.float32)], axis=-1)
    preds_ref[...] = preds

    # --- sum_n (log_post_n - log_prior_n), algebraically folded ---------------
    #   (w - mu)/sigma == eps exactly and the -0.5*log(2*pi) terms cancel:
    #   KL = -N*sum(log sigma) + N*P*log(ps)
    #        - 0.5*sum_n(eps^2) + 0.5*sum_n(w^2)/ps^2
    # The quadratic part is one elementwise integrand per tensor -> one sum each.
    log_ps = float(math.log(prior_sigma))
    inv_ps2 = float(1.0 / (prior_sigma * prior_sigma))
    quad_w = jnp.sum(-0.5 * eps_w * eps_w + (0.5 * inv_ps2) * w_all * w_all)
    quad_b = jnp.sum(-0.5 * eps_b * eps_b + (0.5 * inv_ps2) * b_all * b_all)
    log_sig_term = -float(N) * (jnp.sum(log_sigma_w) + jnp.sum(log_sigma_b))
    n_params_total = N * (D * C + C)
    kl_total = (log_sig_term + jnp.float32(n_params_total * log_ps)
                + quad_w + quad_b)

    # Scalar loss straight to SMEM (no padded VMEM tile / masked vector store).
    loss_ref[0] = (nll_total + kl_total) * jnp.float32(1.0 / N)


def elbo_pallas(x, targets_onehot, mu_w, rho_w, mu_b, rho_b,
                eps_w_flat, eps_b_flat, *, n_samples, prior_sigma=1.0):
    """Returns (loss, predictions) with predictions stacked along dim=-1 -> [B, C, N].

    eps_w_flat: (D, N*C) with eps_w_flat[d, n*C + c] = eps[n, d, c]  (lane-major)
    eps_b_flat: (1, N*C) laid out the same way.
    """
    B, D = x.shape
    C = mu_w.shape[1]
    N = n_samples
    NC = N * C
    nc_pad = ((NC + 127) // 128) * 128                   # lane-dense output width

    # Integer class labels (the PyTorch module does targets.argmax(dim=-1) too).
    labels = jnp.argmax(targets_onehot, axis=-1).astype(jnp.int32).reshape(B, 1)

    vmem = pltpu.MemorySpace.VMEM
    loss, preds_flat = pl.pallas_call(
        functools.partial(_elbo_kernel, n_samples=N, num_classes=C,
                          prior_sigma=float(prior_sigma), nc_pad=nc_pad),
        out_shape=(
            jax.ShapeDtypeStruct((1,), jnp.float32),       # scalar loss (SMEM)
            jax.ShapeDtypeStruct((B, nc_pad), jnp.float32),  # lane-dense preds
        ),
        in_specs=[pl.BlockSpec(memory_space=vmem) for _ in range(8)],
        out_specs=(pl.BlockSpec(memory_space=pltpu.MemorySpace.SMEM),
                   pl.BlockSpec(memory_space=vmem)),
    )(x, labels, mu_w, rho_w, mu_b, rho_b, eps_w_flat, eps_b_flat)

    # (B, nc_pad) -> (B, N, C) -> torch.stack(predictions, dim=-1) layout (B, C, N)
    preds = jnp.transpose(preds_flat[:, :NC].reshape(B, N, C), (0, 2, 1))
    return loss[0], preds


def elbo_reference(x, targets_onehot, mu_w, rho_w, mu_b, rho_b, eps_w, eps_b,
                   *, prior_sigma=1.0):
    """Pure-JAX reference mirroring the PyTorch ELBO.forward loop (full formula)."""
    N = eps_w.shape[0]
    B = x.shape[0]
    sigma_w = jax.nn.softplus(rho_w)
    sigma_b = jax.nn.softplus(rho_b)
    y = jnp.argmax(targets_onehot, axis=-1)

    def glp(v, mu, s):
        return jnp.sum(-0.5 * jnp.log(2.0 * jnp.pi) - jnp.log(s)
                       - 0.5 * ((v - mu) / s) ** 2)

    total = 0.0
    preds_all = []
    for n in range(N):
        w = mu_w + sigma_w * eps_w[n]
        b = mu_b + sigma_b * eps_b[n]
        logits = x @ w + b
        logp = jax.nn.log_softmax(logits, axis=-1)
        preds_all.append(jnp.exp(logp))
        nll = -jnp.sum(logp[jnp.arange(B), y])
        log_post = glp(w, mu_w, sigma_w) + glp(b, mu_b, sigma_b)
        log_prior = glp(w, 0.0, prior_sigma) + glp(b, 0.0, prior_sigma)
        total = total + nll + log_post - log_prior
    return total / N, jnp.stack(preds_all, axis=-1)


if __name__ == "__main__":
    B, D, C, N = 8, 32, 16, 4  # batch, features, classes, MC samples

    key = jax.random.PRNGKey(0)
    kx, ky, kmw, kmb, kew, keb = jax.random.split(key, 6)

    x = jax.random.normal(kx, (B, D), dtype=jnp.float32)
    labels = jax.random.randint(ky, (B,), 0, C)
    targets_onehot = jax.nn.one_hot(labels, C, dtype=jnp.float32)

    # Deterministic variational-parameter init (synthetic; no checkpoint load).
    mu_w = 0.1 * jax.random.normal(kmw, (D, C), dtype=jnp.float32)
    rho_w = jnp.full((D, C), -3.0, dtype=jnp.float32)
    mu_b = 0.1 * jax.random.normal(kmb, (1, C), dtype=jnp.float32)
    rho_b = jnp.full((1, C), -3.0, dtype=jnp.float32)

    # Pre-drawn standard-normal noise, generated directly in the kernel's
    # sample-major lane layout (i.i.d., so the layout choice is free).
    eps_w_flat = jax.random.normal(kew, (D, N * C), dtype=jnp.float32)
    eps_b_flat = jax.random.normal(keb, (1, N * C), dtype=jnp.float32)

    loss, preds = elbo_pallas(x, targets_onehot, mu_w, rho_w, mu_b, rho_b,
                              eps_w_flat, eps_b_flat,
                              n_samples=N, prior_sigma=1.0)
    jax.block_until_ready((loss, preds))

    # Per-sample view of the same noise for the reference:
    # eps_w_flat[d, n*C + c] == eps_w[n, d, c]
    eps_w_ns = jnp.transpose(eps_w_flat.reshape(D, N, C), (1, 0, 2))
    eps_b_ns = jnp.transpose(eps_b_flat.reshape(1, N, C), (1, 0, 2))

    loss_ref, preds_ref = elbo_reference(x, targets_onehot, mu_w, rho_w,
                                         mu_b, rho_b, eps_w_ns, eps_b_ns,
                                         prior_sigma=1.0)
    np.testing.assert_allclose(np.asarray(loss), np.asarray(loss_ref),
                               rtol=1e-4, atol=1e-4)
    np.testing.assert_allclose(np.asarray(preds), np.asarray(preds_ref),
                               rtol=1e-4, atol=1e-5)

    print("KERNEL_OK")
</pallas_src>

<mosaic_0001>
module attributes {stable_mosaic.version = 11 : i64} {
  func.func @_elbo_kernel(%arg0: memref<8x32xf32, #tpu.memory_space<vmem>>, %arg1: memref<8x1xi32, #tpu.memory_space<vmem>>, %arg2: memref<32x16xf32, #tpu.memory_space<vmem>>, %arg3: memref<32x16xf32, #tpu.memory_space<vmem>>, %arg4: memref<1x16xf32, #tpu.memory_space<vmem>>, %arg5: memref<1x16xf32, #tpu.memory_space<vmem>>, %arg6: memref<32x64xf32, #tpu.memory_space<vmem>>, %arg7: memref<1x64xf32, #tpu.memory_space<vmem>>, %arg8: memref<1xf32, #tpu.memory_space<smem>>, %arg9: memref<8x128xf32, #tpu.memory_space<vmem>>) attributes {dimension_semantics = [], scalar_prefetch = 0 : i64, scratch_operands = 0 : i64, tpu.core_type = #tpu.core_type<tc>} {
    %c0 = arith.constant 0 : index
    %c0_0 = arith.constant 0 : index
    %0 = vector.load %arg3[%c0, %c0_0] : memref<32x16xf32, #tpu.memory_space<vmem>>, vector<32x16xf32>
    %cst = arith.constant 0.000000e+00 : f32
    %1 = vector.broadcast %cst : f32 to vector<32x16xf32>
    %2 = arith.maximumf %0, %1 : vector<32x16xf32>
    %3 = vector.broadcast %cst : f32 to vector<32x16xf32>
    %4 = arith.subf %0, %3 : vector<32x16xf32>
    %5 = arith.cmpf one, %4, %4 : vector<32x16xf32>
    %6 = vector.broadcast %cst : f32 to vector<32x16xf32>
    %7 = arith.addf %0, %6 : vector<32x16xf32>
    %8 = math.absf %4 : vector<32x16xf32>
    %cst_1 = arith.constant 0.000000e+00 : f32
    %9 = vector.broadcast %cst_1 : f32 to vector<32x16xf32>
    %10 = arith.subf %9, %8 : vector<32x16xf32>
    %11 = math.exp %10 : vector<32x16xf32>
    %12 = math.log1p %11 : vector<32x16xf32>
    %13 = arith.addf %2, %12 : vector<32x16xf32>
    %14 = arith.select %5, %7, %13 : vector<32x16xi1>, vector<32x16xf32>
    %c0_2 = arith.constant 0 : index
    %c0_3 = arith.constant 0 : index
    %15 = vector.load %arg5[%c0_2, %c0_3] : memref<1x16xf32, #tpu.memory_space<vmem>>, vector<1x16xf32>
    %cst_4 = arith.constant 0.000000e+00 : f32
    %16 = vector.broadcast %cst_4 : f32 to vector<1x16xf32>
    %17 = arith.maximumf %15, %16 : vector<1x16xf32>
    %18 = vector.broadcast %cst_4 : f32 to vector<1x16xf32>
    %19 = arith.subf %15, %18 : vector<1x16xf32>
    %20 = arith.cmpf one, %19, %19 : vector<1x16xf32>
    %21 = vector.broadcast %cst_4 : f32 to vector<1x16xf32>
    %22 = arith.addf %15, %21 : vector<1x16xf32>
    %23 = math.absf %19 : vector<1x16xf32>
    %cst_5 = arith.constant 0.000000e+00 : f32
    %24 = vector.broadcast %cst_5 : f32 to vector<1x16xf32>
    %25 = arith.subf %24, %23 : vector<1x16xf32>
    %26 = math.exp %25 : vector<1x16xf32>
    %27 = math.log1p %26 : vector<1x16xf32>
    %28 = arith.addf %17, %27 : vector<1x16xf32>
    %29 = arith.select %20, %22, %28 : vector<1x16xi1>, vector<1x16xf32>
    %30 = math.log %14 : vector<32x16xf32>
    %31 = math.log %29 : vector<1x16xf32>
    %c0_6 = arith.constant 0 : index
    %c0_7 = arith.constant 0 : index
    %32 = vector.load %arg2[%c0_6, %c0_7] : memref<32x16xf32, #tpu.memory_space<vmem>>, vector<32x16xf32>
    %33 = tpu.concatenate %32, %32, %32, %32 in 1 : vector<32x16xf32>, vector<32x16xf32>, vector<32x16xf32>, vector<32x16xf32> -> vector<32x64xf32>
    %c0_8 = arith.constant 0 : index
    %c0_9 = arith.constant 0 : index
    %34 = vector.load %arg4[%c0_8, %c0_9] : memref<1x16xf32, #tpu.memory_space<vmem>>, vector<1x16xf32>
    %35 = tpu.concatenate %34, %34, %34, %34 in 1 : vector<1x16xf32>, vector<1x16xf32>, vector<1x16xf32>, vector<1x16xf32> -> vector<1x64xf32>
    %36 = tpu.concatenate %14, %14, %14, %14 in 1 : vector<32x16xf32>, vector<32x16xf32>, vector<32x16xf32>, vector<32x16xf32> -> vector<32x64xf32>
    %37 = tpu.concatenate %29, %29, %29, %29 in 1 : vector<1x16xf32>, vector<1x16xf32>, vector<1x16xf32>, vector<1x16xf32> -> vector<1x64xf32>
    %c0_10 = arith.constant 0 : index
    %c0_11 = arith.constant 0 : index
    %38 = vector.load %arg6[%c0_10, %c0_11] : memref<32x64xf32, #tpu.memory_space<vmem>>, vector<32x64xf32>
    %c0_12 = arith.constant 0 : index
    %c0_13 = arith.constant 0 : index
    %39 = vector.load %arg7[%c0_12, %c0_13] : memref<1x64xf32, #tpu.memory_space<vmem>>, vector<1x64xf32>
    %40 = arith.mulf %36, %38 : vector<32x64xf32>
    %41 = arith.addf %33, %40 : vector<32x64xf32>
    %42 = arith.mulf %37, %39 : vector<1x64xf32>
    %43 = arith.addf %35, %42 : vector<1x64xf32>
    %c0_14 = arith.constant 0 : index
    %c0_15 = arith.constant 0 : index
    %44 = vector.load %arg0[%c0_14, %c0_15] : memref<8x32xf32, #tpu.memory_space<vmem>>, vector<8x32xf32>
    %cst_16 = arith.constant dense<0.000000e+00> : vector<8x64xf32>
    %45 = tpu.matmul %44, %41, %cst_16 {dimension_numbers = #tpu.dot_dimension_numbers<[1], [0], [0], [1], [0, 0, 1, 1], [], []>} : vector<8x32xf32>, vector<32x64xf32>, vector<8x64xf32> -> vector<8x64xf32>
    %46 = vector.broadcast %43 : vector<1x64xf32> to vector<8x64xf32>
    %47 = arith.addf %45, %46 : vector<8x64xf32>
    %48 = vector.extract_strided_slice %47 {offsets = [0, 0], sizes = [8, 16], strides = [1, 1]} : vector<8x64xf32> to vector<8x16xf32>
    %cst_17 = arith.constant dense<0xFF800000> : vector<8xf32>
    %49 = vector.multi_reduction <maximumf>, %48, %cst_17 [1] : vector<8x16xf32> to vector<8xf32>
    %50 = vector.shape_cast %49 : vector<8xf32> to vector<8x1xf32>
    %51 = vector.broadcast %50 : vector<8x1xf32> to vector<8x16xf32>
    %52 = arith.subf %48, %51 : vector<8x16xf32>
    %53 = math.exp %52 : vector<8x16xf32>
    %cst_18 = arith.constant dense<0.000000e+00> : vector<8xf32>
    %54 = vector.multi_reduction <add>, %53, %cst_18 [1] : vector<8x16xf32> to vector<8xf32>
    %55 = vector.shape_cast %54 : vector<8xf32> to vector<8x1xf32>
    %56 = math.log %55 : vector<8x1xf32>
    %57 = arith.addf %50, %56 : vector<8x1xf32>
    %58 = vector.broadcast %57 : vector<8x1xf32> to vector<8x16xf32>
    %59 = arith.subf %48, %58 : vector<8x16xf32>
    %60 = vector.extract_strided_slice %47 {offsets = [0, 16], sizes = [8, 16], strides = [1, 1]} : vector<8x64xf32> to vector<8x16xf32>
    %cst_19 = arith.constant dense<0xFF800000> : vector<8xf32>
    %61 = vector.multi_reduction <maximumf>, %60, %cst_19 [1] : vector<8x16xf32> to vector<8xf32>
    %62 = vector.shape_cast %61 : vector<8xf32> to vector<8x1xf32>
    %63 = vector.broadcast %62 : vector<8x1xf32> to vector<8x16xf32>
    %64 = arith.subf %60, %63 : vector<8x16xf32>
    %65 = math.exp %64 : vector<8x16xf32>
    %cst_20 = arith.constant dense<0.000000e+00> : vector<8xf32>
    %66 = vector.multi_reduction <add>, %65, %cst_20 [1] : vector<8x16xf32> to vector<8xf32>
    %67 = vector.shape_cast %66 : vector<8xf32> to vector<8x1xf32>
    %68 = math.log %67 : vector<8x1xf32>
    %69 = arith.addf %62, %68 : vector<8x1xf32>
    %70 = vector.broadcast %69 : vector<8x1xf32> to vector<8x16xf32>
    %71 = arith.subf %60, %70 : vector<8x16xf32>
    %72 = vector.extract_strided_slice %47 {offsets = [0, 32], sizes = [8, 16], strides = [1, 1]} : vector<8x64xf32> to vector<8x16xf32>
    %cst_21 = arith.constant dense<0xFF800000> : vector<8xf32>
    %73 = vector.multi_reduction <maximumf>, %72, %cst_21 [1] : vector<8x16xf32> to vector<8xf32>
    %74 = vector.shape_cast %73 : vector<8xf32> to vector<8x1xf32>
    %75 = vector.broadcast %74 : vector<8x1xf32> to vector<8x16xf32>
    %76 = arith.subf %72, %75 : vector<8x16xf32>
    %77 = math.exp %76 : vector<8x16xf32>
    %cst_22 = arith.constant dense<0.000000e+00> : vector<8xf32>
    %78 = vector.multi_reduction <add>, %77, %cst_22 [1] : vector<8x16xf32> to vector<8xf32>
    %79 = vector.shape_cast %78 : vector<8xf32> to vector<8x1xf32>
    %80 = math.log %79 : vector<8x1xf32>
    %81 = arith.addf %74, %80 : vector<8x1xf32>
    %82 = vector.broadcast %81 : vector<8x1xf32> to vector<8x16xf32>
    %83 = arith.subf %72, %82 : vector<8x16xf32>
    %84 = vector.extract_strided_slice %47 {offsets = [0, 48], sizes = [8, 16], strides = [1, 1]} : vector<8x64xf32> to vector<8x16xf32>
    %cst_23 = arith.constant dense<0xFF800000> : vector<8xf32>
    %85 = vector.multi_reduction <maximumf>, %84, %cst_23 [1] : vector<8x16xf32> to vector<8xf32>
    %86 = vector.shape_cast %85 : vector<8xf32> to vector<8x1xf32>
    %87 = vector.broadcast %86 : vector<8x1xf32> to vector<8x16xf32>
    %88 = arith.subf %84, %87 : vector<8x16xf32>
    %89 = math.exp %88 : vector<8x16xf32>
    %cst_24 = arith.constant dense<0.000000e+00> : vector<8xf32>
    %90 = vector.multi_reduction <add>, %89, %cst_24 [1] : vector<8x16xf32> to vector<8xf32>
    %91 = vector.shape_cast %90 : vector<8xf32> to vector<8x1xf32>
    %92 = math.log %91 : vector<8x1xf32>
    %93 = arith.addf %86, %92 : vector<8x1xf32>
    %94 = vector.broadcast %93 : vector<8x1xf32> to vector<8x16xf32>
    %95 = arith.subf %84, %94 : vector<8x16xf32>
    %96 = tpu.concatenate %59, %71, %83, %95 in 1 : vector<8x16xf32>, vector<8x16xf32>, vector<8x16xf32>, vector<8x16xf32> -> vector<8x64xf32>
    %97 = tpu.iota {dimensions = array<i32: 1>} : vector<8x16xi32>
    %c0_25 = arith.constant 0 : index
    %c0_26 = arith.constant 0 : index
    %98 = vector.load %arg1[%c0_25, %c0_26] : memref<8x1xi32, #tpu.memory_space<vmem>>, vector<8x1xi32>
    %99 = vector.broadcast %98 : vector<8x1xi32> to vector<8x16xi32>
    %100 = arith.cmpi eq, %97, %99 : vector<8x16xi32>
    %101 = arith.extui %100 : vector<8x16xi1> to vector<8x16xi32>
    %102 = arith.sitofp %101 : vector<8x16xi32> to vector<8x16xf32>
    %103 = tpu.concatenate %102, %102, %102, %102 in 1 : vector<8x16xf32>, vector<8x16xf32>, vector<8x16xf32>, vector<8x16xf32> -> vector<8x64xf32>
    %104 = arith.mulf %103, %96 : vector<8x64xf32>
    %105 = vector.shape_cast %104 : vector<8x64xf32> to vector<1x8x64xf32>
    %cst_27 = arith.constant dense<0.000000e+00> : vector<1xf32>
    %106 = vector.multi_reduction <add>, %105, %cst_27 [1, 2] : vector<1x8x64xf32> to vector<1xf32>
    %107 = vector.shape_cast %106 : vector<1xf32> to vector<1x1x1xf32>
    %108 = vector.extract %107[0, 0, 0] : f32 from vector<1x1x1xf32>
    %cst_28 = arith.constant 0.000000e+00 : f32
    %109 = arith.subf %cst_28, %108 : f32
    %110 = math.exp %96 : vector<8x64xf32>
    %cst_29 = arith.constant 0.000000e+00 : f32
    %111 = vector.broadcast %cst_29 : f32 to vector<8x64xf32>
    %112 = tpu.concatenate %110, %111 in 1 : vector<8x64xf32>, vector<8x64xf32> -> vector<8x128xf32>
    %c0_30 = arith.constant 0 : index
    %c0_31 = arith.constant 0 : index
    %113 = vector.load %arg9[%c0_30, %c0_31] : memref<8x128xf32, #tpu.memory_space<vmem>>, vector<8x128xf32>
    tpu.vector_store %arg9[%c0_30, %c0_31], %112 {strides = array<i32>} : memref<8x128xf32, #tpu.memory_space<vmem>>, vector<8x128xf32>,
    %cst_32 = arith.constant -5.000000e-01 : f32
    %114 = vector.broadcast %cst_32 : f32 to vector<32x64xf32>
    %115 = arith.mulf %114, %38 : vector<32x64xf32>
    %116 = arith.mulf %115, %38 : vector<32x64xf32>
    %cst_33 = arith.constant 5.000000e-01 : f32
    %117 = vector.broadcast %cst_33 : f32 to vector<32x64xf32>
    %118 = arith.mulf %117, %41 : vector<32x64xf32>
    %119 = arith.mulf %118, %41 : vector<32x64xf32>
    %120 = arith.addf %116, %119 : vector<32x64xf32>
    %121 = vector.shape_cast %120 : vector<32x64xf32> to vector<1x32x64xf32>
    %cst_34 = arith.constant dense<0.000000e+00> : vector<1xf32>
    %122 = vector.multi_reduction <add>, %121, %cst_34 [1, 2] : vector<1x32x64xf32> to vector<1xf32>
    %123 = vector.shape_cast %122 : vector<1xf32> to vector<1x1x1xf32>
    %124 = vector.extract %123[0, 0, 0] : f32 from vector<1x1x1xf32>
    %cst_35 = arith.constant -5.000000e-01 : f32
    %125 = vector.broadcast %cst_35 : f32 to vector<1x64xf32>
    %126 = arith.mulf %125, %39 : vector<1x64xf32>
    %127 = arith.mulf %126, %39 : vector<1x64xf32>
    %cst_36 = arith.constant 5.000000e-01 : f32
    %128 = vector.broadcast %cst_36 : f32 to vector<1x64xf32>
    %129 = arith.mulf %128, %43 : vector<1x64xf32>
    %130 = arith.mulf %129, %43 : vector<1x64xf32>
    %131 = arith.addf %127, %130 : vector<1x64xf32>
    %132 = vector.shape_cast %131 : vector<1x64xf32> to vector<1x1x64xf32>
    %cst_37 = arith.constant dense<0.000000e+00> : vector<1xf32>
    %133 = vector.multi_reduction <add>, %132, %cst_37 [1, 2] : vector<1x1x64xf32> to vector<1xf32>
    %134 = vector.shape_cast %133 : vector<1xf32> to vector<1x1x1xf32>
    %135 = vector.extract %134[0, 0, 0] : f32 from vector<1x1x1xf32>
    %136 = vector.shape_cast %30 : vector<32x16xf32> to vector<1x32x16xf32>
    %cst_38 = arith.constant dense<0.000000e+00> : vector<1xf32>
    %137 = vector.multi_reduction <add>, %136, %cst_38 [1, 2] : vector<1x32x16xf32> to vector<1xf32>
    %138 = vector.shape_cast %137 : vector<1xf32> to vector<1x1x1xf32>
    %139 = vector.extract %138[0, 0, 0] : f32 from vector<1x1x1xf32>
    %140 = vector.shape_cast %31 : vector<1x16xf32> to vector<1x1x16xf32>
    %cst_39 = arith.constant dense<0.000000e+00> : vector<1xf32>
    %141 = vector.multi_reduction <add>, %140, %cst_39 [1, 2] : vector<1x1x16xf32> to vector<1xf32>
    %142 = vector.shape_cast %141 : vector<1xf32> to vector<1x1x1xf32>
    %143 = vector.extract %142[0, 0, 0] : f32 from vector<1x1x1xf32>
    %144 = arith.addf %139, %143 : f32
    %cst_40 = arith.constant -4.000000e+00 : f32
    %145 = arith.mulf %cst_40, %144 : f32
    %cst_41 = arith.constant 0.000000e+00 : f32
    %146 = arith.addf %145, %cst_41 : f32
    %147 = arith.addf %146, %124 : f32
    %148 = arith.addf %147, %135 : f32
    %149 = arith.addf %109, %148 : f32
    %cst_42 = arith.constant 2.500000e-01 : f32
    %150 = arith.mulf %149, %cst_42 : f32
    %c0_43 = arith.constant 0 : index
    %151 = memref.load %arg8[%c0_43] : memref<1xf32, #tpu.memory_space<smem>>
    memref.store %150, %arg8[%c0_43] : memref<1xf32, #tpu.memory_space<smem>>
    return
  }
}

</mosaic_0001>

<llo_original>
// kernel: tpu_custom_call.1
$region0: #{tpu_custom_call.1}
  #allocation0 [shape = 'u32[]', space=smem, size = 0x4, offset = 0x4, fixed_abs, tag = 'smem constant byte address 0x4 - core index']
  #allocation1 [shape = 'u32[144,128]{1,0:T(1,128)}', space=vmem, size = 0x12000, scoped, tag = 'internal scratch']
  %s0 = inlined_call_operand.vmem [shape: f32[8,32], index: 0, kind: input, shape index: {}]
  %s1 = inlined_call_operand.vmem [shape: s32[8,1], index: 1, kind: input, shape index: {}]
  %s2 = inlined_call_operand.vmem [shape: f32[32,16], index: 2, kind: input, shape index: {}]
  %s3 = inlined_call_operand.vmem [shape: f32[32,16], index: 3, kind: input, shape index: {}]
  %s4 = inlined_call_operand.vmem [shape: f32[1,16], index: 4, kind: input, shape index: {}]
  %s5 = inlined_call_operand.vmem [shape: f32[1,16], index: 5, kind: input, shape index: {}]
  %s6 = inlined_call_operand.vmem [shape: f32[32,64], index: 6, kind: input, shape index: {}]
  %s7 = inlined_call_operand.vmem [shape: f32[1,64], index: 7, kind: input, shape index: {}]
  %s8 = inlined_call_operand.hbm [shape: f32[1], index: 8, kind: output, shape index: {0}]
  %s9 = inlined_call_operand.hbm [shape: f32[8,128], index: 9, kind: output, shape index: {1}]
  %10 = xla_tuple %s8, %s9
  %s11 = sld [smem:[#allocation0]]
  $region50: #{tpu_custom_call.1} parent=0
    _
  %s13 = ssub.s32 1, %s11
  %s14 = scalar_select 0, %s13, %s11
  $region1: #{tpu_custom_call.1} parent=0
    #allocation2 [shape = 'u8[512]{0}', space=smem, size = 0x200, scoped, tag = 'output window, operand 0, single buffered']
    #allocation3 [shape = 's32[1]{0}', space=sflag, size = 0x4, scoped, tag = 'scoped memory for tpu_custom_call.1']
    #allocation4 [shape = 's32[1]{0}', space=sflag, size = 0x4, scoped, tag = 'scoped memory for tpu_custom_call.1']
    #allocation5 [shape = 'u8[4096]{0}', space=vmem, size = 0x1000, scoped, tag = 'output window, operand 1, single buffered']
    %15 = vsyncpa [#allocation4], 0
    %16 = vsyncpa [#allocation3], 0
    // Predicated region
    $region2: #{tpu_custom_call.1} parent=1 // pred_check
      _
    $region3: #{tpu_custom_call.1} parent=1 // pred_check_branch
      %18 = sbr.rel (0) target = $region5
    $region4: #{tpu_custom_call.1} parent=1 // pred_region
      _
    $region5: #{tpu_custom_call.1} parent=1 // pred_fallthru
      _
    // Predicated region
    $region6: #{tpu_custom_call.1} parent=1 // pred_check
      _
    $region7: #{tpu_custom_call.1} parent=1 // pred_check_branch
      %20 = sbr.rel (0) target = $region9
    $region8: #{tpu_custom_call.1} parent=1 // pred_region
      _
    $region9: #{tpu_custom_call.1} parent=1 // pred_fallthru
      _
    // Predicated region
    $region10: #{tpu_custom_call.1} parent=1 // pred_check
      _
    $region11: #{tpu_custom_call.1} parent=1 // pred_check_branch
      %22 = sbr.rel (0) target = $region13
    $region12: #{tpu_custom_call.1} parent=1 // pred_region
      _
    $region13: #{tpu_custom_call.1} parent=1 // pred_fallthru
      _
    // Predicated region
    $region14: #{tpu_custom_call.1} parent=1 // pred_check
      _
    $region15: #{tpu_custom_call.1} parent=1 // pred_check_branch
      %24 = sbr.rel (0) target = $region17
    $region16: #{tpu_custom_call.1} parent=1 // pred_region
      _
    $region17: #{tpu_custom_call.1} parent=1 // pred_fallthru
      _
    // Predicated region
    $region18: #{tpu_custom_call.1} parent=1 // pred_check
      _
    $region19: #{tpu_custom_call.1} parent=1 // pred_check_branch
      %26 = sbr.rel (0) target = $region21
    $region20: #{tpu_custom_call.1} parent=1 // pred_region
      _
    $region21: #{tpu_custom_call.1} parent=1 // pred_fallthru
      _
    // Predicated region
    $region22: #{tpu_custom_call.1} parent=1 // pred_check
      _
    $region23: #{tpu_custom_call.1} parent=1 // pred_check_branch
      %28 = sbr.rel (0) target = $region25
    $region24: #{tpu_custom_call.1} parent=1 // pred_region
      _
    $region25: #{tpu_custom_call.1} parent=1 // pred_fallthru
      _
    // Predicated region
    $region26: #{tpu_custom_call.1} parent=1 // pred_check
      _
    $region27: #{tpu_custom_call.1} parent=1 // pred_check_branch
      %30 = sbr.rel (0) target = $region29
    $region28: #{tpu_custom_call.1} parent=1 // pred_region
      _
    $region29: #{tpu_custom_call.1} parent=1 // pred_fallthru
      _
    // Predicated region
    $region30: #{tpu_custom_call.1} parent=1 // pred_check
      _
    $region31: #{tpu_custom_call.1} parent=1 // pred_check_branch
      %32 = sbr.rel (0) target = $region33
    $region32: #{tpu_custom_call.1} parent=1 // pred_region
      _
    $region33: #{tpu_custom_call.1} parent=1 // pred_fallthru
      _
    %v33 = vld [vmem:[%s3] sm:$0xff]
    %v34 = vld [vmem:[%s3 + $0x8] sm:$0xff]
    %v35 = vld [vmem:[%s3 + $0x10] sm:$0xff]
    %v36 = vld [vmem:[%s3 + $0x18] sm:$0xff]
    %v37 = vmax.f32 %v33, 0.0
    %v38 = vmax.f32 %v34, 0.0
    %v39 = vmax.f32 %v35, 0.0
    %v40 = vmax.f32 %v36, 0.0
    %vm41 = vcmp.ne.f32.partialorder %v33, %v33
    %vm42 = vcmp.ne.f32.partialorder %v34, %v34
    %vm43 = vcmp.ne.f32.partialorder %v35, %v35
    %vm44 = vcmp.ne.f32.partialorder %v36, %v36
    %v45 = vadd.f32 %v33, 0.0
    %v46 = vadd.f32 %v34, 0.0
    %v47 = vadd.f32 %v35, 0.0
    %v48 = vadd.f32 %v36, 0.0
    %v49 = vand.u32 2147483647, %v33
    %v50 = vand.u32 2147483647, %v34
    %v51 = vand.u32 2147483647, %v35
    %v52 = vand.u32 2147483647, %v36
    %v53 = vsub.f32 0.0, %v49
    %v54 = vsub.f32 0.0, %v50
    %v55 = vsub.f32 0.0, %v51
    %v56 = vsub.f32 0.0, %v52
    %v57 = vmul.f32 %v53, 1.442695
    %v58 = vpow.pop %v57
    %v59 = vmul.f32 %v54, 1.442695
    %v60 = vpow.pop %v59
    %v61 = vmul.f32 %v55, 1.442695
    %v62 = vpow.pop %v61
    %v63 = vmul.f32 %v56, 1.442695
    %v64 = vpow.pop %v63
    %v65 = vadd.f32 %v58, 1.0
    %v66 = vlog2.pop %v65
    %v67 = vmul.f32 %v66, 0.6931472
    %v68 = vmul.f32 -0.5, %v58
    %v69 = vadd.f32 %v68, 1.0
    %v70 = vmul.f32 %v69, %v58
    %v71 = vand.u32 2147483647, %v58
    %vm72 = vcmp.lt.f32.partialorder %v71, 0.0004427343
    %v73 = vsel %vm72, %v70, %v67
    %v74 = vadd.f32 %v60, 1.0
    %v75 = vlog2.pop %v74
    %v76 = vmul.f32 %v75, 0.6931472
    %v77 = vmul.f32 -0.5, %v60
    %v78 = vadd.f32 %v77, 1.0
    %v79 = vmul.f32 %v78, %v60
    %v80 = vand.u32 2147483647, %v60
    %vm81 = vcmp.lt.f32.partialorder %v80, 0.0004427343
    %v82 = vsel %vm81, %v79, %v76
    %v83 = vadd.f32 %v62, 1.0
    %v84 = vlog2.pop %v83
    %v85 = vmul.f32 %v84, 0.6931472
    %v86 = vmul.f32 -0.5, %v62
    %v87 = vadd.f32 %v86, 1.0
    %v88 = vmul.f32 %v87, %v62
    %v89 = vand.u32 2147483647, %v62
    %vm90 = vcmp.lt.f32.partialorder %v89, 0.0004427343
    %v91 = vsel %vm90, %v88, %v85
    %v92 = vadd.f32 %v64, 1.0
    %v93 = vlog2.pop %v92
    %v94 = vmul.f32 %v93, 0.6931472
    %v95 = vmul.f32 -0.5, %v64
    %v96 = vadd.f32 %v95, 1.0
    %v97 = vmul.f32 %v96, %v64
    %v98 = vand.u32 2147483647, %v64
    %vm99 = vcmp.lt.f32.partialorder %v98, 0.0004427343
    %v100 = vsel %vm99, %v97, %v94
    %v101 = vadd.f32 %v37, %v73
    %v102 = vadd.f32 %v38, %v82
    %v103 = vadd.f32 %v39, %v91
    %v104 = vadd.f32 %v40, %v100
    %v105 = vsel %vm41, %v45, %v101
    %v106 = vsel %vm42, %v46, %v102
    %v107 = vsel %vm43, %v47, %v103
    %v108 = vsel %vm44, %v48, %v104
    %v109 = vld [vmem:[%s5] sm:$0x1]
    %v110 = vmax.f32 %v109, 0.0
    %vm111 = vcmp.ne.f32.partialorder %v109, %v109
    %v112 = vadd.f32 %v109, 0.0
    %v113 = vand.u32 2147483647, %v109
    %v114 = vsub.f32 0.0, %v113
    %v115 = vmul.f32 %v114, 1.442695
    %v116 = vpow.pop %v115
    %v117 = vadd.f32 %v116, 1.0
    %v118 = vlog2.pop %v117
    %v119 = vmul.f32 %v118, 0.6931472
    %v120 = vmul.f32 -0.5, %v116
    %v121 = vadd.f32 %v120, 1.0
    %v122 = vmul.f32 %v121, %v116
    %v123 = vand.u32 2147483647, %v116
    %vm124 = vcmp.lt.f32.partialorder %v123, 0.0004427343
    %v125 = vsel %vm124, %v122, %v119
    %v126 = vadd.f32 %v110, %v125
    %v127 = vsel %vm111, %v112, %v126
    %v128 = vlog2.pop %v105
    %v129 = vmul.f32 %v128, 0.6931472
    %v130 = vlog2.pop %v106
    %v131 = vmul.f32 %v130, 0.6931472
    %v132 = vlog2.pop %v107
    %v133 = vmul.f32 %v132, 0.6931472
    %v134 = vlog2.pop %v108
    %v135 = vmul.f32 %v134, 0.6931472
    %v136 = vlog2.pop %v127
    %v137 = vmul.f32 %v136, 0.6931472
    %v138 = vld [vmem:[%s2] sm:$0xff]
    %v139 = vld [vmem:[%s2 + $0x8] sm:$0xff]
    %v140 = vld [vmem:[%s2 + $0x10] sm:$0xff]
    %v141 = vld [vmem:[%s2 + $0x18] sm:$0xff]
    %146 = vrot.lane.b32.xlu0 %v138, 16
    %v147 = vpop.permute.xlu0 %146
    %148 = vrot.lane.b32.xlu0 %v139, 16
    %v149 = vpop.permute.xlu0 %148
    %150 = vrot.lane.b32.xlu0 %v140, 16
    %v151 = vpop.permute.xlu0 %150
    %152 = vrot.lane.b32.xlu0 %v141, 16
    %v153 = vpop.permute.xlu0 %152
    %158 = vrot.lane.b32.xlu0 %v138, 32
    %v159 = vpop.permute.xlu0 %158
    %160 = vrot.lane.b32.xlu0 %v139, 32
    %v161 = vpop.permute.xlu0 %160
    %162 = vrot.lane.b32.xlu0 %v140, 32
    %v163 = vpop.permute.xlu0 %162
    %164 = vrot.lane.b32.xlu0 %v141, 32
    %v165 = vpop.permute.xlu0 %164
    %170 = vrot.lane.b32.xlu0 %v138, 48
    %v171 = vpop.permute.xlu0 %170
    %172 = vrot.lane.b32.xlu0 %v139, 48
    %v173 = vpop.permute.xlu0 %172
    %174 = vrot.lane.b32.xlu0 %v140, 48
    %v175 = vpop.permute.xlu0 %174
    %176 = vrot.lane.b32.xlu0 %v141, 48
    %v177 = vpop.permute.xlu0 %176
    %vm182 = vcmask 130048
    %v183 = vsel %vm182, %v138, %v147
    %v184 = vsel %vm182, %v139, %v149
    %v185 = vsel %vm182, %v140, %v151
    %v186 = vsel %vm182, %v141, %v153
    %vm187 = vcmask 261120
    %v188 = vsel %vm187, %v183, %v159
    %v189 = vsel %vm187, %v184, %v161
    %v190 = vsel %vm187, %v185, %v163
    %v191 = vsel %vm187, %v186, %v165
    %vm192 = vcmask 392192
    %v193 = vsel %vm192, %v188, %v171
    %v194 = vsel %vm192, %v189, %v173
    %v195 = vsel %vm192, %v190, %v175
    %v196 = vsel %vm192, %v191, %v177
    %v197 = vld [vmem:[%s4] sm:$0x1]
    %v199 = vlaneseq
    %v200 = vshrl.u32 %v199, 7
    %v201 = vsub.s32 0, %v200
    %v202 = vrot.slane %v197, %v201
    %203 = vrot.lane.b32.xlu0 %v202, 16
    %v204 = vpop.permute.xlu0 %203
    %206 = vrot.lane.b32.xlu0 %v202, 32
    %v207 = vpop.permute.xlu0 %206
    %209 = vrot.lane.b32.xlu0 %v202, 48
    %v210 = vpop.permute.xlu0 %209
    %v212 = vsel %vm182, %v197, %v204
    %v213 = vsel %vm187, %v212, %v207
    %v214 = vsel %vm192, %v213, %v210
    %219 = vrot.lane.b32.xlu0 %v105, 16
    %v220 = vpop.permute.xlu0 %219
    %221 = vrot.lane.b32.xlu0 %v106, 16
    %v222 = vpop.permute.xlu0 %221
    %223 = vrot.lane.b32.xlu0 %v107, 16
    %v224 = vpop.permute.xlu0 %223
    %225 = vrot.lane.b32.xlu0 %v108, 16
    %v226 = vpop.permute.xlu0 %225
    %231 = vrot.lane.b32.xlu0 %v105, 32
    %v232 = vpop.permute.xlu0 %231
    %233 = vrot.lane.b32.xlu0 %v106, 32
    %v234 = vpop.permute.xlu0 %233
    %235 = vrot.lane.b32.xlu0 %v107, 32
    %v236 = vpop.permute.xlu0 %235
    %237 = vrot.lane.b32.xlu0 %v108, 32
    %v238 = vpop.permute.xlu0 %237
    %243 = vrot.lane.b32.xlu0 %v105, 48
    %v244 = vpop.permute.xlu0 %243
    %245 = vrot.lane.b32.xlu0 %v106, 48
    %v246 = vpop.permute.xlu0 %245
    %247 = vrot.lane.b32.xlu0 %v107, 48
    %v248 = vpop.permute.xlu0 %247
    %249 = vrot.lane.b32.xlu0 %v108, 48
    %v250 = vpop.permute.xlu0 %249
    %v255 = vsel %vm182, %v105, %v220
    %v256 = vsel %vm182, %v106, %v222
    %v257 = vsel %vm182, %v107, %v224
    %v258 = vsel %vm182, %v108, %v226
    %v259 = vsel %vm187, %v255, %v232
    %v260 = vsel %vm187, %v256, %v234
    %v261 = vsel %vm187, %v257, %v236
    %v262 = vsel %vm187, %v258, %v238
    %v263 = vsel %vm192, %v259, %v244
    %v264 = vsel %vm192, %v260, %v246
    %v265 = vsel %vm192, %v261, %v248
    %v266 = vsel %vm192, %v262, %v250
    %v268 = vlaneseq
    %v269 = vshrl.u32 %v268, 7
    %v270 = vsub.s32 0, %v269
    %v271 = vrot.slane %v127, %v270
    %272 = vrot.lane.b32.xlu0 %v271, 16
    %v273 = vpop.permute.xlu0 %272
    %275 = vrot.lane.b32.xlu0 %v271, 32
    %v276 = vpop.permute.xlu0 %275
    %278 = vrot.lane.b32.xlu0 %v271, 48
    %v279 = vpop.permute.xlu0 %278
    %v281 = vsel %vm182, %v127, %v273
    %v282 = vsel %vm187, %v281, %v276
    %v283 = vsel %vm192, %v282, %v279
    %v284 = vld [vmem:[%s6] sm:$0xff]
    %v285 = vld [vmem:[%s6 + $0x8] sm:$0xff]
    %v286 = vld [vmem:[%s6 + $0x10] sm:$0xff]
    %v287 = vld [vmem:[%s6 + $0x18] sm:$0xff]
    %v288 = vld [vmem:[%s7] sm:$0x1]
    %v289 = vmul.f32 %v263, %v284
    %v290 = vmul.f32 %v264, %v285
    %v291 = vmul.f32 %v265, %v286
    %v292 = vmul.f32 %v266, %v287
    %v293 = vadd.f32 %v193, %v289
    %v294 = vadd.f32 %v194, %v290
    %v295 = vadd.f32 %v195, %v291
    %v296 = vadd.f32 %v196, %v292
    %v297 = vmul.f32 %v283, %v288
    %v298 = vadd.f32 %v214, %v297
    %v299 = vld [vmem:[%s0] sm:$0xff]
    %v300 = vlaneseq
    %v301 = vshrl.u32 %v300, 7
    %v302 = vsub.s32 0, %v301
    %v303 = vrot.slane %v298, %v302
    %v305 = vsel %vm187, %v299, 0
    %307 = vmatprep.subr.mxu0 0.0
    %308 = vmatpush1.msra.mxu0 %v293
    %309 = vmatprep.subr.mxu0 0.0
    %310 = vmatpush1.msra.mxu0 %v294
    %311 = vmatprep.subr.mxu0 0.0
    %312 = vmatpush1.msra.mxu0 %v295
    %313 = vmatprep.subr.mxu0 0.0
    %314 = vmatpush1.msra.mxu0 %v296
    %315 = vmatprep.subr.mxu0 0.0
    %316 = vmatpush1.msra.mxu0 0.0
    %317 = vmatprep.subr.mxu0 0.0
    %318 = vmatpush1.msra.mxu0 0.0
    %319 = vmatprep.subr.mxu0 0.0
    %320 = vmatpush1.msra.mxu0 0.0
    %321 = vmatprep.subr.mxu0 0.0
    %322 = vmatpush1.msra.mxu0 0.0
    %323 = vmatprep.subr.mxu0 0.0
    %324 = vmatpush1.msra.mxu0 0.0
    %325 = vmatprep.subr.mxu0 0.0
    %326 = vmatpush1.msra.mxu0 0.0
    %327 = vmatprep.subr.mxu0 0.0
    %328 = vmatpush1.msra.mxu0 0.0
    %329 = vmatprep.subr.mxu0 0.0
    %330 = vmatpush1.msra.mxu0 0.0
    %331 = vmatprep.subr.mxu0 0.0
    %332 = vmatpush1.msra.mxu0 0.0
    %333 = vmatprep.subr.mxu0 0.0
    %334 = vmatpush1.msra.mxu0 0.0
    %335 = vmatprep.subr.mxu0 0.0
    %336 = vmatpush1.msra.mxu0 0.0
    %337 = vmatprep.subr.mxu0 0.0
    %338 = vmatpush1.msra.mxu0 0.0
    %339 = vmatprep.subr.mxu0 0.0
    %340 = vmatpush1.msra.mxu0 0.0
    %341 = vmatprep.subr.mxu0 0.0
    %342 = vmatpush1.msra.mxu0 0.0
    %343 = vmatprep.subr.mxu0 0.0
    %344 = vmatpush1.msra.mxu0 0.0
    %345 = vmatprep.subr.mxu0 0.0
    %346 = vmatpush1.msra.mxu0 0.0
    %347 = vmatprep.subr.mxu0 0.0
    %348 = vmatpush1.msra.mxu0 0.0
    %349 = vmatprep.subr.mxu0 0.0
    %350 = vmatpush1.msra.mxu0 0.0
    %351 = vmatprep.subr.mxu0 0.0
    %352 = vmatpush1.msra.mxu0 0.0
    %353 = vmatprep.subr.mxu0 0.0
    %354 = vmatpush1.msra.mxu0 0.0
    %355 = vmatprep.subr.mxu0 0.0
    %356 = vmatpush1.msra.mxu0 0.0
    %357 = vmatprep.subr.mxu0 0.0
    %358 = vmatpush1.msra.mxu0 0.0
    %359 = vmatprep.subr.mxu0 0.0
    %360 = vmatpush1.msra.mxu0 0.0
    %361 = vmatprep.subr.mxu0 0.0
    %362 = vmatpush1.msra.mxu0 0.0
    %363 = vmatprep.subr.mxu0 0.0
    %364 = vmatpush1.msra.mxu0 0.0
    %365 = vmatprep.subr.mxu0 0.0
    %366 = vmatpush1.msra.mxu0 0.0
    %367 = vmatprep.subr.mxu0 0.0
    %368 = vmatpush1.msra.mxu0 0.0
    %369 = vmatprep.subr.mxu0 0.0
    %370 = vmatpush1.msra.mxu0 0.0
    %371 = vmatprep.mubr.f32.mxu0 0.0
    %372 = vmatmul.mubr.f32.gmra.mrb[0].mxu0 %v305
    %v373 = vpop.f32.mrb[0].mxu0
    %v374 = vadd.f32 %v303, %v373
    %v375 = vpop.f32.mrb[0].mxu0
    %376 = vdwg.mxu0
    %v377 = vsel %vm182, %v374, -inf
    %378 = vmax.xlane.f32.xlu0 %v377
    %v379 = vpop.xlane.xlu0 %378
    %v380 = vsub.f32 %v374, %v379
    %v381 = vmul.f32 %v380, 1.442695
    %v382 = vpow.pop %v381
    %v383 = vsel %vm182, %v382, 0.0
    %384 = vadd.xlane.f32.xlu0 %v383
    %v385 = vpop.xlane.xlu0 %384
    %v386 = vlog2.pop %v385
    %v387 = vmul.f32 %v386, 0.6931472
    %v388 = vadd.f32 %v379, %v387
    %v389 = vsub.f32 %v374, %v388
    %vm390 = vcmask 261248
    %v391 = vsel %vm390, %v374, -inf
    %392 = vmax.xlane.f32.xlu0 %v391
    %v393 = vpop.xlane.xlu0 %392
    %v394 = vsub.f32 %v374, %v393
    %v395 = vmul.f32 %v394, 1.442695
    %v396 = vpow.pop %v395
    %398 = vrot.lane.b32.xlu0 %v396, 112
    %v399 = vpop.permute.xlu0 %398
    %v401 = vsel %vm182, %v399, 0.0
    %402 = vadd.xlane.f32.xlu0 %v401
    %v403 = vpop.xlane.xlu0 %402
    %v404 = vlog2.pop %v403
    %v405 = vmul.f32 %v404, 0.6931472
    %v406 = vadd.f32 %v393, %v405
    %v407 = vsub.f32 %v374, %v406
    %vm408 = vcmask 392448
    %v409 = vsel %vm408, %v374, -inf
    %410 = vmax.xlane.f32.xlu0 %v409
    %v411 = vpop.xlane.xlu0 %410
    %v412 = vsub.f32 %v374, %v411
    %v413 = vmul.f32 %v412, 1.442695
    %v414 = vpow.pop %v413
    %416 = vrot.lane.b32.xlu0 %v414, 96
    %v417 = vpop.permute.xlu0 %416
    %v419 = vsel %vm182, %v417, 0.0
    %420 = vadd.xlane.f32.xlu0 %v419
    %v421 = vpop.xlane.xlu0 %420
    %v422 = vlog2.pop %v421
    %v423 = vmul.f32 %v422, 0.6931472
    %v424 = vadd.f32 %v411, %v423
    %v425 = vsub.f32 %v374, %v424
    %vm426 = vcmask 523648
    %v427 = vsel %vm426, %v374, -inf
    %428 = vmax.xlane.f32.xlu0 %v427
    %v429 = vpop.xlane.xlu0 %428
    %v430 = vsub.f32 %v374, %v429
    %v431 = vmul.f32 %v430, 1.442695
    %v432 = vpow.pop %v431
    %434 = vrot.lane.b32.xlu0 %v432, 80
    %v435 = vpop.permute.xlu0 %434
    %v437 = vsel %vm182, %v435, 0.0
    %438 = vadd.xlane.f32.xlu0 %v437
    %v439 = vpop.xlane.xlu0 %438
    %v440 = vlog2.pop %v439
    %v441 = vmul.f32 %v440, 0.6931472
    %v442 = vadd.f32 %v429, %v441
    %v443 = vsub.f32 %v374, %v442
    %v444 = vsel %vm182, %v389, %v407
    %v445 = vsel %vm187, %v444, %v425
    %v446 = vsel %vm192, %v445, %v443
    %v447 = vlaneseq
    %v448 = vand.u32 %v447, 127
    %v449 = vld [vmem:[%s1] sm:$0xff]
    %450 = vset.pattern.permute.xlu0 0
    %451 = vperm.xlu0 %450, %v449
    %v452 = vpop.permute.xlu0 %451
    %vm453 = vcmp.eq.s32.totalorder %v448, %v452
    %v454 = vsel %vm453, 1, 0
    %v455 = vcvt.s32.f32 %v454
    %457 = vrot.lane.b32.xlu0 %v455, 16
    %v458 = vpop.permute.xlu0 %457
    %460 = vrot.lane.b32.xlu0 %v455, 32
    %v461 = vpop.permute.xlu0 %460
    %463 = vrot.lane.b32.xlu0 %v455, 48
    %v464 = vpop.permute.xlu0 %463
    %v466 = vsel %vm182, %v455, %v458
    %v467 = vsel %vm187, %v466, %v461
    %v468 = vsel %vm192, %v467, %v464
    %v469 = vmul.f32 %v468, %v446
    %vm470 = vcmask 523264
    %v471 = vsel %vm470, %v469, 0.0
    %472 = vadd.xlane.f32.xlu0 %v471
    %v473 = vpop.xlane.xlu0 %472
    %v474 = vrot.slane %v473, 4
    %v475 = vadd.f32 %v473, %v474
    %v476 = vrot.slane %v475, 2
    %v477 = vadd.f32 %v475, %v476
    %v478 = vrot.slane %v477, 1
    %v479 = vadd.f32 %v477, %v478
    %s480 = vtos %v479
    %s481 = ssub.f32 0.0, %s480
    %v482 = vmul.f32 %v446, 1.442695
    %v483 = vpow.pop %v482
    %v484 = vsel %vm470, %v483, 0.0
    %485 = vst [vmem:[#allocation5] sm:$0xff] %v484
    %v486 = vmul.f32 %v284, -0.5
    %v487 = vmul.f32 %v285, -0.5
    %v488 = vmul.f32 %v286, -0.5
    %v489 = vmul.f32 %v287, -0.5
    %v490 = vmul.f32 %v486, %v284
    %v491 = vmul.f32 %v487, %v285
    %v492 = vmul.f32 %v488, %v286
    %v493 = vmul.f32 %v489, %v287
    %v494 = vmul.f32 %v293, 0.5
    %v495 = vmul.f32 %v294, 0.5
    %v496 = vmul.f32 %v295, 0.5
    %v497 = vmul.f32 %v296, 0.5
    %v498 = vmul.f32 %v494, %v293
    %v499 = vmul.f32 %v495, %v294
    %v500 = vmul.f32 %v496, %v295
    %v501 = vmul.f32 %v497, %v296
    %v502 = vadd.f32 %v490, %v498
    %v503 = vadd.f32 %v491, %v499
    %v504 = vadd.f32 %v492, %v500
    %v505 = vadd.f32 %v493, %v501
    %v506 = vsel %vm470, %v502, 0.0
    %v507 = vsel %vm470, %v503, 0.0
    %v508 = vadd.f32 %v506, %v507
    %v509 = vsel %vm470, %v504, 0.0
    %v510 = vadd.f32 %v508, %v509
    %v511 = vsel %vm470, %v505, 0.0
    %v512 = vadd.f32 %v510, %v511
    %513 = vadd.xlane.f32.xlu0 %v512
    %v514 = vpop.xlane.xlu0 %513
    %v515 = vrot.slane %v514, 4
    %v516 = vadd.f32 %v514, %v515
    %v517 = vrot.slane %v516, 2
    %v518 = vadd.f32 %v516, %v517
    %v519 = vrot.slane %v518, 1
    %v520 = vadd.f32 %v518, %v519
    %s521 = vtos %v520
    %v522 = vmul.f32 %v288, -0.5
    %v523 = vmul.f32 %v522, %v288
    %v524 = vmul.f32 %v298, 0.5
    %v525 = vmul.f32 %v524, %v298
    %v526 = vadd.f32 %v523, %v525
    %vm527 = vcmask 516096
    %v528 = vsel %vm527, %v526, 0.0
    %529 = vadd.xlane.f32.xlu0 %v528
    %v530 = vpop.xlane.xlu0 %529
    %v531 = vrot.slane %v530, 4
    %v532 = vadd.f32 %v530, %v531
    %v533 = vrot.slane %v532, 2
    %v534 = vadd.f32 %v532, %v533
    %v535 = vrot.slane %v534, 1
    %v536 = vadd.f32 %v534, %v535
    %s537 = vtos %v536
    %v538 = vsel %vm182, %v129, 0.0
    %v539 = vsel %vm182, %v131, 0.0
    %v540 = vadd.f32 %v538, %v539
    %v541 = vsel %vm182, %v133, 0.0
    %v542 = vadd.f32 %v540, %v541
    %v543 = vsel %vm182, %v135, 0.0
    %v544 = vadd.f32 %v542, %v543
    %545 = vadd.xlane.f32.xlu0 %v544
    %v546 = vpop.xlane.xlu0 %545
    %v547 = vrot.slane %v546, 4
    %v548 = vadd.f32 %v546, %v547
    %v549 = vrot.slane %v548, 2
    %v550 = vadd.f32 %v548, %v549
    %v551 = vrot.slane %v550, 1
    %v552 = vadd.f32 %v550, %v551
    %s553 = vtos %v552
    %vm554 = vcmask 122880
    %v555 = vsel %vm554, %v137, 0.0
    %556 = vadd.xlane.f32.xlu0 %v555
    %v557 = vpop.xlane.xlu0 %556
    %v558 = vrot.slane %v557, 4
    %v559 = vadd.f32 %v557, %v558
    %v560 = vrot.slane %v559, 2
    %v561 = vadd.f32 %v559, %v560
    %v562 = vrot.slane %v561, 1
    %v563 = vadd.f32 %v561, %v562
    %s564 = vtos %v563
    %s565 = sadd.f32 %s553, %s564
    %s566 = smul.f32 %s565, -4.0
    %s567 = sadd.f32 %s566, 0.0
    %s568 = sadd.f32 %s567, %s521
    %s569 = sadd.f32 %s568, %s537
    %s570 = sadd.f32 %s481, %s569
    %s571 = smul.f32 %s570, 0.25
    %s572 = scalar_lea.smem [#allocation2], 0
    %573 = sst [smem:[%s572]] %s571
    // Predicated region
    $region34: #{tpu_custom_call.1} parent=1 // pred_check
      _
    $region35: #{tpu_custom_call.1} parent=1 // pred_check_branch
      %575 = sbr.rel (0) target = $region37
    $region36: #{tpu_custom_call.1} parent=1 // pred_region
      %s577 = ssub.s32 16, 16
      %578 = vsyncadd [#allocation4], %s577
      %581 = dma.smem_to_hbm [#allocation2], 16, %s8, [#allocation4]
    $region37: #{tpu_custom_call.1} parent=1 // pred_fallthru
      _
    // Predicated region
    $region38: #{tpu_custom_call.1} parent=1 // pred_check
      _
    $region39: #{tpu_custom_call.1} parent=1 // pred_check_branch
      %583 = sbr.rel (0) target = $region41
    $region40: #{tpu_custom_call.1} parent=1 // pred_region
      %s585 = ssub.s32 128, 128
      %586 = vsyncadd [#allocation3], %s585
      %s588 = sshll.u32 [#allocation5], 4
      %s589 = int_to_ptr.vmem [resolvable:$true] %s588
      %591 = dma.vmem_to_hbm [thread:$0]  %s589, 128, %s9, [#allocation3]
    $region41: #{tpu_custom_call.1} parent=1 // pred_fallthru
      _
    // Predicated region
    $region42: #{tpu_custom_call.1} parent=1 // pred_check
      _
    $region43: #{tpu_custom_call.1} parent=1 // pred_check_branch
      %593 = sbr.rel (0) target = $region45
    $region44: #{tpu_custom_call.1} parent=1 // pred_region
      %594 = dma.done [#allocation4], 16
    $region45: #{tpu_custom_call.1} parent=1 // pred_fallthru
      _
    // Predicated region
    $region46: #{tpu_custom_call.1} parent=1 // pred_check
      _
    $region47: #{tpu_custom_call.1} parent=1 // pred_check_branch
      %596 = sbr.rel (0) target = $region49
    $region48: #{tpu_custom_call.1} parent=1 // pred_region
      %597 = dma.done [#allocation3], 128
    $region49: #{tpu_custom_call.1} parent=1 // pred_fallthru
      _
    %598 = sfence
    %599 = vsyncpa [#allocation3], 1
    %600 = vsyncpa [#allocation4], 1

</llo_original>
